<compile_context>
chip_gen: v7x
topology: tpu7x:2x2x1
jax: 0.10.0
libtpu: 0.0.40
codegen_flags: <defaults>
</compile_context>

<pallas_src>
import functools

import jax
import jax.numpy as jnp
from jax import lax
from jax.experimental import pallas as pl
from jax.experimental.pallas import tpu as pltpu


def _co_dice_kernel(pred_ref, gt_ref, out_ref, a_acc, rs_acc, *, eps):
    """Grid = (batch blocks, HW chunks). Accumulate over HW, finalize on last chunk."""
    k = pl.program_id(1)
    nk = pl.num_programs(1)

    @pl.when(k == 0)
    def _init():
        a_acc[...] = jnp.zeros_like(a_acc)
        rs_acc[...] = jnp.zeros_like(rs_acc)

    # (Bt, G, TK) chunk; upcast after load, elementwise math stays f32 (v5e has
    # no bf16 VPU/EUP).  Sigmoid as a single EUP op: sigmoid(x) = 0.5*tanh(x/2)+0.5.
    x = pred_ref[...].astype(jnp.float32)
    p = 0.5 * jnp.tanh(0.5 * x) + 0.5                       # (Bt, G, TK) f32

    # Pairwise inner products on the MXU: bf16 operands (peak MXU rate on all
    # generations), f32 accumulation across HW chunks.
    p_mm = p.astype(jnp.bfloat16)
    a_acc[...] += jnp.einsum(
        "bgs,bhs->bgh", p_mm, p_mm, preferred_element_type=jnp.float32
    )                                                       # (Bt, G, G)
    # Per-mask spatial sums: single f32 accumulator, no per-chunk ones matmuls.
    rs_acc[...] += jnp.sum(p, axis=-1, keepdims=True)       # (Bt, G, 1)

    @pl.when(k == nk - 1)
    def _finalize():
        a = a_acc[...]                                      # (Bt, G, G)
        b = rs_acc[...] + eps                               # (Bt, G, 1)
        ones_col = jnp.ones_like(b)                         # (Bt, G, 1)
        # Row-broadcast of b (entry [i,j] = b[j]) via one tiny K=1 matmul,
        # only on the last chunk of each batch block.
        b_row = jnp.einsum(
            "bio,bjo->bij", ones_col, b, preferred_element_type=jnp.float32
        )                                                   # (Bt, G, G)
        d = (2.0 * a) / (b + b_row)

        bt, g, _ = a.shape
        row = lax.broadcasted_iota(jnp.int32, (bt, g, g), 1)
        col = lax.broadcasted_iota(jnp.int32, (bt, g, g), 2)
        d = jnp.where(col > row, d, 0.0)                    # triu(d, diagonal=1)
        d = jnp.clip(d, 0.0, 1.0)                           # guard bf16 rounding at d~1

        gt = gt_ref[...].astype(jnp.float32)
        # PyTorch-style BCE: log clamped at -100, so gt * log(0) contributes 0.
        log_d = jnp.maximum(jnp.log(d), -100.0)
        log_1md = jnp.maximum(jnp.log(1.0 - d), -100.0)
        bce = -(gt * log_d + (1.0 - gt) * log_1md)

        # Reduce only over the sublane (row) axis; the cross-lane sum and the
        # global mean are finished in the wrapper.
        out_ref[...] = jnp.sum(bce, axis=1, keepdims=True).astype(out_ref.dtype)


def _tpu_vmem_config():
    """Generation-aware VMEM limits.

    Returns (vmem_limit_bytes, tile_budget_bytes, small_vmem) where small_vmem
    indicates a 64 MiB/TC part (v7x: 2 TensorCores per chip).
    """
    phys = None
    try:
        phys = int(pltpu.get_tpu_info().vmem_capacity_bytes)
    except Exception:
        phys = None
    if not phys or phys <= 0:
        phys = 64 * 1024 * 1024                 # conservative fallback
    small_vmem = phys <= 64 * 1024 * 1024       # v7x-class
    vmem_limit = int(phys * 0.75)               # ~96 MiB v5e/v6e, ~48 MiB v7x
    budget = int(vmem_limit * 0.7)              # headroom for compiler scratch
    return vmem_limit, budget, small_vmem


def _pick_tiles(B, G, HW, itemsize, *, vmem_budget_bytes, pred_buffers, max_bt=None):
    """Choose (Bt, TK): batch elements per grid step and HW-chunk width.

    Prefer the largest HW chunk (fewer contraction steps, better DMA
    pipelining), then the largest batch block that still fits the per-step
    VMEM working set.  max_bt caps Bt so the parallel axis keeps >=2 steps on
    two-TensorCore chips.
    """

    def cost(bt, tk):
        pred_bufs = pred_buffers * bt * G * tk * itemsize   # streamed pred chunk
        p_live = bt * G * tk * (4 + 2)                      # f32 sigmoid + bf16 MXU copy
        gt_bufs = 2 * bt * G * G * 4                        # double-buffered gt block
        out_bufs = 2 * bt * 1 * G * 4                       # tiny partial-sum output
        scratch = bt * G * (G + 1) * 4                      # a_acc + rs_acc
        return pred_bufs + p_live + gt_bufs + out_bufs + scratch

    tk_cands = {HW}
    if HW % 128 == 0:
        for mult in range(HW // 128, 0, -1):
            if HW % (mult * 128) == 0:
                tk_cands.add(mult * 128)
    tk_cands = sorted(tk_cands, reverse=True)

    bt_cands = sorted({d for d in range(1, B + 1) if B % d == 0}, reverse=True)
    if max_bt is not None:
        capped = [d for d in bt_cands if d <= max_bt]
        bt_cands = capped if capped else [1]

    for tk in tk_cands:
        for bt in bt_cands:
            if cost(bt, tk) <= vmem_budget_bytes:
                return bt, tk
    return 1, min(tk_cands)


def co_mask_dice_loss(pred, label_matrixs, *, eps=1e-3, loss_weight=1.0):
    """pred: (B, G, H, W) float (f32 or bf16); label_matrixs: (B, G, G) in {0,1}."""
    B, G, H, W = pred.shape
    HW = H * W

    # Keep pred in its native dtype (bf16 stays bf16); upcast happens in-kernel.
    pred_flat = pred.reshape(B, G, HW)
    gt = label_matrixs.astype(jnp.float32)

    vmem_limit, budget, small_vmem = _tpu_vmem_config()
    two_cores = small_vmem                        # v7x heuristic: 64 MiB VMEM, 2 TCs
    pred_buffers = 2 if small_vmem else 3         # trade the 3rd buffer for bigger TK on v7x
    max_bt = max(1, B // 2) if (two_cores and B >= 2) else None

    itemsize = pred_flat.dtype.itemsize
    Bt, TK = _pick_tiles(
        B, G, HW, itemsize,
        vmem_budget_bytes=budget, pred_buffers=pred_buffers, max_bt=max_bt,
    )
    nb = B // Bt
    nk = HW // TK

    if nk > 1 and pred_buffers > 2:
        # Deeper pipelining on the streamed pred chunks (hides DMA latency on
        # v5e/v6e's lower HBM bandwidth; 128 MiB VMEM leaves room for it).
        pred_spec = pl.BlockSpec(
            (Bt, G, TK), lambda b, k: (b, 0, k), pipeline_mode=pl.Buffered(pred_buffers)
        )
    else:
        pred_spec = pl.BlockSpec((Bt, G, TK), lambda b, k: (b, 0, k))

    kernel = functools.partial(_co_dice_kernel, eps=float(eps))

    cost = pl.CostEstimate(
        flops=2 * B * G * G * HW + 4 * B * G * HW,
        transcendentals=B * G * HW + 2 * B * G * G,
        bytes_accessed=B * G * HW * itemsize + B * G * G * 4 + B * G * 4,
    )

    # TODO(synk): for very large G on v7x, gt could be kept in pl.ANY and fetched
    # with a manual make_async_copy just before the last HW chunk to free VMEM.
    partials = pl.pallas_call(
        kernel,
        out_shape=jax.ShapeDtypeStruct((B, 1, G), jnp.float32),
        grid_spec=pltpu.PrefetchScalarGridSpec(
            num_scalar_prefetch=0,
            grid=(nb, nk),
            in_specs=[
                pred_spec,
                pl.BlockSpec((Bt, G, G), lambda b, k: (b, 0, 0)),
            ],
            out_specs=pl.BlockSpec((Bt, 1, G), lambda b, k: (b, 0, 0)),
            scratch_shapes=[
                pltpu.VMEM((Bt, G, G), jnp.float32),   # Gram accumulator
                pltpu.VMEM((Bt, G, 1), jnp.float32),   # per-mask spatial sums
            ],
        ),
        compiler_params=pltpu.CompilerParams(
            dimension_semantics=("parallel", "arbitrary"),
            vmem_limit_bytes=vmem_limit,
        ),
        cost_estimate=cost,
    )(pred_flat, gt)

    # Partial BCE sums (reduced over rows in-kernel) -> finish columns + batch
    # here, then BCE 'mean' over all B*G*G terms.
    # weight=None / avg_factor=None / reduction='mean' on a scalar is identity.
    loss = jnp.sum(partials) / jnp.float32(B * G * G)
    return loss_weight * loss


def _reference_loss(pred, label_matrixs, eps=1e-3, loss_weight=1.0):
    """Pure-JAX reference of the same forward semantics (for a sanity check)."""
    B, G, H, W = pred.shape
    p = jax.nn.sigmoid(pred.astype(jnp.float32)).reshape(B, G, H * W)
    a = jnp.einsum("bgs,bhs->bgh", p, p, precision=lax.Precision.HIGHEST)
    b = jnp.sum(p, axis=-1) + eps
    d = 2.0 * a / (b[:, :, None] + b[:, None, :])
    d = jnp.triu(d, k=1)
    gt = label_matrixs.astype(jnp.float32)
    log_d = jnp.maximum(jnp.log(d), -100.0)
    log_1md = jnp.maximum(jnp.log(1.0 - d), -100.0)
    bce = -(gt * log_d + (1.0 - gt) * log_1md)
    return loss_weight * jnp.mean(bce)


if __name__ == "__main__":
    key = jax.random.PRNGKey(0)
    k_pred, k_lbl = jax.random.split(key)

    B, G, H, W = 2, 8, 16, 16  # batch, num_grid, spatial
    pred = jax.random.normal(k_pred, (B, G, H, W), dtype=jnp.float32)

    # Binary label matrices; strict upper triangle (matches the triu'd prediction).
    raw = (jax.random.uniform(k_lbl, (B, G, G)) > 0.5).astype(jnp.float32)
    label_matrixs = jnp.triu(raw, k=1)

    loss = co_mask_dice_loss(pred, label_matrixs, eps=1e-3, loss_weight=1.0)
    jax.block_until_ready(loss)

    ref = _reference_loss(pred, label_matrixs, eps=1e-3, loss_weight=1.0)
    # bf16 MXU operands (f32 accumulation) vs. the f32/HIGHEST reference:
    # element-wise rounding averages out over HW, so a slightly relaxed but
    # still tight tolerance is appropriate.
    assert jnp.allclose(loss, ref, rtol=2e-3, atol=1e-3), (float(loss), float(ref))

    print("KERNEL_OK")
</pallas_src>

<mosaic_0001>
module attributes {stable_mosaic.version = 11 : i64} {
  func.func @_co_dice_kernel(%arg0: i32, %arg1: i32, %arg2: memref<1x8x256xf32, #tpu.memory_space<vmem>>, %arg3: memref<1x8x8xf32, #tpu.memory_space<vmem>>, %arg4: memref<1x1x8xf32, #tpu.memory_space<vmem>>, %arg5: memref<1x8x8xf32, #tpu.memory_space<vmem>>, %arg6: memref<1x8x1xf32, #tpu.memory_space<vmem>>) attributes {dimension_semantics = [#tpu.dimension_semantics<parallel>, #tpu.dimension_semantics<arbitrary>], iteration_bounds = array<i64: 2, 1>, scalar_prefetch = 0 : i64, scratch_operands = 2 : i64, tpu.core_type = #tpu.core_type<tc>, window_params = [{transform_indices = @transform_0, window_bounds = array<i64: 1, 8, 256>}, {transform_indices = @transform_1, window_bounds = array<i64: 1, 8, 8>}, {transform_indices = @transform_2, window_bounds = array<i64: 1, 1, 8>}]} {
    %c0_i32 = arith.constant 0 : i32
    %0 = arith.cmpi eq, %arg1, %c0_i32 : i32
    %1 = arith.extui %0 : i1 to i32
    %c0_i32_0 = arith.constant 0 : i32
    %2 = arith.cmpi ne, %1, %c0_i32_0 : i32
    scf.if %2 {
      %cst_21 = arith.constant 0.000000e+00 : f32
      %24 = vector.broadcast %cst_21 : f32 to vector<1x8x8xf32>
      %c0_22 = arith.constant 0 : index
      %c0_23 = arith.constant 0 : index
      %c0_24 = arith.constant 0 : index
      %25 = vector.load %arg5[%c0_22, %c0_23, %c0_24] : memref<1x8x8xf32, #tpu.memory_space<vmem>>, vector<1x8x8xf32>
      tpu.vector_store %arg5[%c0_22, %c0_23, %c0_24], %24 {strides = array<i32>} : memref<1x8x8xf32, #tpu.memory_space<vmem>>, vector<1x8x8xf32>,
      %cst_25 = arith.constant 0.000000e+00 : f32
      %26 = vector.broadcast %cst_25 : f32 to vector<1x8x1xf32>
      %c0_26 = arith.constant 0 : index
      %c0_27 = arith.constant 0 : index
      %c0_28 = arith.constant 0 : index
      %27 = vector.load %arg6[%c0_26, %c0_27, %c0_28] : memref<1x8x1xf32, #tpu.memory_space<vmem>>, vector<1x8x1xf32>
      tpu.vector_store %arg6[%c0_26, %c0_27, %c0_28], %26 {strides = array<i32>} : memref<1x8x1xf32, #tpu.memory_space<vmem>>, vector<1x8x1xf32>,
    } else {
    }
    %c0 = arith.constant 0 : index
    %c0_1 = arith.constant 0 : index
    %c0_2 = arith.constant 0 : index
    %3 = vector.load %arg2[%c0, %c0_1, %c0_2] : memref<1x8x256xf32, #tpu.memory_space<vmem>>, vector<1x8x256xf32>
    %cst = arith.constant 5.000000e-01 : f32
    %4 = vector.broadcast %cst : f32 to vector<1x8x256xf32>
    %5 = arith.mulf %4, %3 : vector<1x8x256xf32>
    %6 = math.tanh %5 : vector<1x8x256xf32>
    %cst_3 = arith.constant 5.000000e-01 : f32
    %7 = vector.broadcast %cst_3 : f32 to vector<1x8x256xf32>
    %8 = arith.mulf %7, %6 : vector<1x8x256xf32>
    %cst_4 = arith.constant 5.000000e-01 : f32
    %9 = vector.broadcast %cst_4 : f32 to vector<1x8x256xf32>
    %10 = arith.addf %8, %9 : vector<1x8x256xf32>
    %11 = arith.truncf %10 : vector<1x8x256xf32> to vector<1x8x256xbf16>
    %c0_5 = arith.constant 0 : index
    %c0_6 = arith.constant 0 : index
    %c0_7 = arith.constant 0 : index
    %12 = vector.load %arg5[%c0_5, %c0_6, %c0_7] : memref<1x8x8xf32, #tpu.memory_space<vmem>>, vector<1x8x8xf32>
    "tpu.trace_start"() <{level = 10 : i32, message = "bgs,bhs->bgh"}> : () -> ()
    %cst_8 = arith.constant dense<0.000000e+00> : vector<1x8x8xf32>
    %13 = tpu.matmul %11, %11, %cst_8 {dimension_numbers = #tpu.dot_dimension_numbers<[2], [2], [1], [1], [0, 0, 0, 1, 1, 1], [0], [0]>} : vector<1x8x256xbf16>, vector<1x8x256xbf16>, vector<1x8x8xf32> -> vector<1x8x8xf32>
    "tpu.trace_stop"() : () -> ()
    %14 = arith.addf %12, %13 : vector<1x8x8xf32>
    %c0_9 = arith.constant 0 : index
    %c0_10 = arith.constant 0 : index
    %c0_11 = arith.constant 0 : index
    %15 = vector.load %arg5[%c0_9, %c0_10, %c0_11] : memref<1x8x8xf32, #tpu.memory_space<vmem>>, vector<1x8x8xf32>
    tpu.vector_store %arg5[%c0_9, %c0_10, %c0_11], %14 {strides = array<i32>} : memref<1x8x8xf32, #tpu.memory_space<vmem>>, vector<1x8x8xf32>,
    %c0_12 = arith.constant 0 : index
    %c0_13 = arith.constant 0 : index
    %c0_14 = arith.constant 0 : index
    %16 = vector.load %arg6[%c0_12, %c0_13, %c0_14] : memref<1x8x1xf32, #tpu.memory_space<vmem>>, vector<1x8x1xf32>
    %cst_15 = arith.constant dense<0.000000e+00> : vector<1x8xf32>
    %17 = vector.multi_reduction <add>, %10, %cst_15 [2] : vector<1x8x256xf32> to vector<1x8xf32>
    %18 = vector.shape_cast %17 : vector<1x8xf32> to vector<1x8x1xf32>
    %19 = arith.addf %16, %18 : vector<1x8x1xf32>
    %c0_16 = arith.constant 0 : index
    %c0_17 = arith.constant 0 : index
    %c0_18 = arith.constant 0 : index
    %20 = vector.load %arg6[%c0_16, %c0_17, %c0_18] : memref<1x8x1xf32, #tpu.memory_space<vmem>>, vector<1x8x1xf32>
    tpu.vector_store %arg6[%c0_16, %c0_17, %c0_18], %19 {strides = array<i32>} : memref<1x8x1xf32, #tpu.memory_space<vmem>>, vector<1x8x1xf32>,
    %c0_i32_19 = arith.constant 0 : i32
    %21 = arith.cmpi eq, %arg1, %c0_i32_19 : i32
    %22 = arith.extui %21 : i1 to i32
    %c0_i32_20 = arith.constant 0 : i32
    %23 = arith.cmpi ne, %22, %c0_i32_20 : i32
    scf.if %23 {
      %c0_21 = arith.constant 0 : index
      %c0_22 = arith.constant 0 : index
      %c0_23 = arith.constant 0 : index
      %24 = vector.load %arg5[%c0_21, %c0_22, %c0_23] : memref<1x8x8xf32, #tpu.memory_space<vmem>>, vector<1x8x8xf32>
      %c0_24 = arith.constant 0 : index
      %c0_25 = arith.constant 0 : index
      %c0_26 = arith.constant 0 : index
      %25 = vector.load %arg6[%c0_24, %c0_25, %c0_26] : memref<1x8x1xf32, #tpu.memory_space<vmem>>, vector<1x8x1xf32>
      %cst_27 = arith.constant 1.000000e-03 : f32
      %26 = vector.broadcast %cst_27 : f32 to vector<1x8x1xf32>
      %27 = arith.addf %25, %26 : vector<1x8x1xf32>
      %cst_28 = arith.constant 1.000000e+00 : f32
      %28 = vector.broadcast %cst_28 : f32 to vector<1x8x1xf32>
      "tpu.trace_start"() <{level = 10 : i32, message = "bio,bjo->bij"}> : () -> ()
      %cst_29 = arith.constant dense<0.000000e+00> : vector<1x8x8xf32>
      %29 = tpu.matmul %28, %27, %cst_29 {dimension_numbers = #tpu.dot_dimension_numbers<[2], [2], [1], [1], [0, 0, 0, 1, 1, 1], [0], [0]>} : vector<1x8x1xf32>, vector<1x8x1xf32>, vector<1x8x8xf32> -> vector<1x8x8xf32>
      "tpu.trace_stop"() : () -> ()
      %cst_30 = arith.constant 2.000000e+00 : f32
      %30 = vector.broadcast %cst_30 : f32 to vector<1x8x8xf32>
      %31 = arith.mulf %30, %24 : vector<1x8x8xf32>
      %32 = vector.broadcast %27 : vector<1x8x1xf32> to vector<1x8x8xf32>
      %33 = arith.addf %32, %29 : vector<1x8x8xf32>
      %34 = arith.divf %31, %33 : vector<1x8x8xf32>
      %35 = tpu.iota {dimensions = array<i32: 1>} : vector<1x8x8xi32>
      %36 = tpu.iota {dimensions = array<i32: 2>} : vector<1x8x8xi32>
      %37 = arith.cmpi sgt, %36, %35 : vector<1x8x8xi32>
      %cst_31 = arith.constant 0.000000e+00 : f32
      %38 = vector.broadcast %cst_31 : f32 to vector<1x8x8xf32>
      %39 = arith.select %37, %34, %38 : vector<1x8x8xi1>, vector<1x8x8xf32>
      %cst_32 = arith.constant 0.000000e+00 : f32
      %cst_33 = arith.constant 1.000000e+00 : f32
      %40 = vector.broadcast %cst_32 : f32 to vector<1x8x8xf32>
      %41 = arith.maximumf %40, %39 : vector<1x8x8xf32>
      %42 = vector.broadcast %cst_33 : f32 to vector<1x8x8xf32>
      %43 = arith.minimumf %42, %41 : vector<1x8x8xf32>
      %c0_34 = arith.constant 0 : index
      %c0_35 = arith.constant 0 : index
      %c0_36 = arith.constant 0 : index
      %44 = vector.load %arg3[%c0_34, %c0_35, %c0_36] : memref<1x8x8xf32, #tpu.memory_space<vmem>>, vector<1x8x8xf32>
      %45 = math.log %43 : vector<1x8x8xf32>
      %cst_37 = arith.constant -1.000000e+02 : f32
      %46 = vector.broadcast %cst_37 : f32 to vector<1x8x8xf32>
      %47 = arith.maximumf %45, %46 : vector<1x8x8xf32>
      %cst_38 = arith.constant 1.000000e+00 : f32
      %48 = vector.broadcast %cst_38 : f32 to vector<1x8x8xf32>
      %49 = arith.subf %48, %43 : vector<1x8x8xf32>
      %50 = math.log %49 : vector<1x8x8xf32>
      %cst_39 = arith.constant -1.000000e+02 : f32
      %51 = vector.broadcast %cst_39 : f32 to vector<1x8x8xf32>
      %52 = arith.maximumf %50, %51 : vector<1x8x8xf32>
      %53 = arith.mulf %44, %47 : vector<1x8x8xf32>
      %cst_40 = arith.constant 1.000000e+00 : f32
      %54 = vector.broadcast %cst_40 : f32 to vector<1x8x8xf32>
      %55 = arith.subf %54, %44 : vector<1x8x8xf32>
      %56 = arith.mulf %55, %52 : vector<1x8x8xf32>
      %57 = arith.addf %53, %56 : vector<1x8x8xf32>
      %cst_41 = arith.constant 0.000000e+00 : f32
      %58 = vector.broadcast %cst_41 : f32 to vector<1x8x8xf32>
      %59 = arith.subf %58, %57 : vector<1x8x8xf32>
      %cst_42 = arith.constant dense<0.000000e+00> : vector<1x8xf32>
      %60 = vector.multi_reduction <add>, %59, %cst_42 [1] : vector<1x8x8xf32> to vector<1x8xf32>
      %61 = vector.shape_cast %60 : vector<1x8xf32> to vector<1x1x8xf32>
      %c0_43 = arith.constant 0 : index
      %c0_44 = arith.constant 0 : index
      %c0_45 = arith.constant 0 : index
      %62 = vector.load %arg4[%c0_43, %c0_44, %c0_45] : memref<1x1x8xf32, #tpu.memory_space<vmem>>, vector<1x1x8xf32>
      tpu.vector_store %arg4[%c0_43, %c0_44, %c0_45], %61 {strides = array<i32>} : memref<1x1x8xf32, #tpu.memory_space<vmem>>, vector<1x1x8xf32>,
    } else {
    }
    return
  }
  func.func @transform_0(%arg0: i32, %arg1: i32) -> (i32, i32, i32) {
    %c0_i32 = arith.constant 0 : i32
    %c0_i32_0 = arith.constant 0 : i32
    return %arg0, %c0_i32, %arg1 : i32, i32, i32
  }
  func.func @transform_1(%arg0: i32, %arg1: i32) -> (i32, i32, i32) {
    %c0_i32 = arith.constant 0 : i32
    %c0_i32_0 = arith.constant 0 : i32
    %c0_i32_1 = arith.constant 0 : i32
    return %arg0, %c0_i32, %c0_i32_0 : i32, i32, i32
  }
  func.func @transform_2(%arg0: i32, %arg1: i32) -> (i32, i32, i32) {
    %c0_i32 = arith.constant 0 : i32
    %c0_i32_0 = arith.constant 0 : i32
    %c0_i32_1 = arith.constant 0 : i32
    return %arg0, %c0_i32, %c0_i32_0 : i32, i32, i32
  }
}

</mosaic_0001>

<llo_original>
// kernel: tpu_custom_call.1
$region0: #{tpu_custom_call.1}
  #allocation0 [shape = 'u32[]', space=smem, size = 0x4, offset = 0x4, fixed_abs, tag = 'smem constant byte address 0x4 - core index']
  #allocation1 [shape = 'u32[144,128]{1,0:T(1,128)}', space=vmem, size = 0x12000, scoped, tag = 'internal scratch']
  #allocation2 [shape = 'f32[1,8,8]{2,1,0:T(8,128)}', space=vmem, size = 0x1000, scoped, tag = 'scratch operand']
  #allocation3 [shape = 'f32[1,8,1]{2,1,0:T(8,128)}', space=vmem, size = 0x1000, scoped, tag = 'scratch operand']
  %s0 = inlined_call_operand.hbm [shape: f32[2,8,256], index: 0, kind: input, shape index: {}]
  %s1 = inlined_call_operand.hbm [shape: f32[2,8,8], index: 1, kind: input, shape index: {}]
  %s2 = inlined_call_operand.hbm [shape: f32[2,1,8], index: 2, kind: output, shape index: {}]
  %s3 = sld [smem:[#allocation0]]
  $region57: #{tpu_custom_call.1} parent=0
    _
  %s5 = ssub.s32 1, %s3
  %s6 = scalar_select 0, %s5, %s3
  $region1: #{tpu_custom_call.1} parent=0
    #allocation4 [shape = 'u8[16384]{0}', space=vmem, size = 0x4000, scoped, tag = 'input window, operand 0']
    #allocation5 [shape = 's32[2]{0}', space=sflag, size = 0x8, scoped, tag = 'scoped memory for tpu_custom_call.1']
    #allocation6 [shape = 's32[2]{0}', space=sflag, size = 0x8, scoped, tag = 'scoped memory for tpu_custom_call.1']
    #allocation7 [shape = 'u8[8192]{0}', space=vmem, size = 0x2000, scoped, tag = 'input window, operand 1']
    #allocation8 [shape = 's32[2]{0}', space=sflag, size = 0x8, scoped, tag = 'scoped memory for tpu_custom_call.1']
    #allocation9 [shape = 'u8[1024]{0}', space=vmem, size = 0x400, scoped, tag = 'output window, operand 0']
    %7 = vsyncpa [#allocation5], 0
    %s8 = scalar_lea.sflag [#allocation5], 1
    %9 = vsyncpa %s8, 0
    %10 = vsyncpa [#allocation8], 0
    %s11 = scalar_lea.sflag [#allocation8], 1
    %12 = vsyncpa %s11, 0
    %13 = vsyncpa [#allocation6], 0
    %s14 = scalar_lea.sflag [#allocation6], 1
    %15 = vsyncpa %s14, 0
    loop: start=0, step=1, limit=4
    $region2: #{tpu_custom_call.1} parent=1 // loop_pre_header
      _
    $region3: #{tpu_custom_call.1} parent=1 // loop_header
      %s17 = sphi 0, %s21
      %p18 = scmp.ge.s32.totalorder %s17, 4
      %s24 = sphi 0, %s36
      %s25 = sphi 0, %s32
      %s26 = sphi 0, %s24
      %s27 = sphi 0, %s25
      %s28 = sphi 0, %s26
      %s29 = sphi 0, %s27
      %s41 = sphi 0, %s43
      %s44 = sphi 0, %s41
      %s45 = sphi 0, %s44
      %s61 = sphi 0, %s45
      %s67 = sphi 0, %s69
      %s70 = sphi 0, %s67
      %s71 = sphi 0, %s70
      %s87 = sphi 0, %s71
      %s93 = sphi 0, %s95
      %s96 = sphi 0, %s93
      %s97 = sphi 0, %s96
      %s113 = sphi 0, %s97
    $region4: #{tpu_custom_call.1} parent=1 // loop_header_branch
      %20 = sbr.rel (%p18) target = $region8
    $region5: #{tpu_custom_call.1} parent=1 // loop_body
      %s22 = ssub.s32 %s17, 1
      %s23 = ssub.s32 %s17, 2
      %s30 = sadd.s32 1, %s25
      %p31 = scmp.ge.s32.totalorder %s30, 1
      %s32 = scalar_select %p31, 0, %s30
      %s33 = sadd.s32 1, %s24
      %s34 = scalar_select %p31, %s33, %s24
      %p35 = scmp.ge.s32.totalorder %s34, 2
      %s36 = scalar_select %p35, 0, %s34
      %s37 = ssub.s32 %s24, %s36
      %s38 = ssub.s32 %s25, %s32
      %s39 = sor.u32 %s37, %s38
      %p40 = scmp.eq.s32.totalorder %s39, 0
      %s42 = sadd.s32 %s41, 1
      %s43 = scalar_select %p40, %s41, %s42
      %p46 = pneg %p40
      %p47 = scmp.eq.s32.totalorder %s17, 1
      %p48 = por %p46, %p47
      %p49 = scmp.ne.s32.totalorder %s41, %s44
      %p50 = scmp.eq.s32.totalorder %s17, 0
      %p51 = por %p49, %p50
      %p52 = scmp.ne.s32.totalorder %s41, %s44
      %p53 = scmp.eq.s32.totalorder %s22, 1
      %p54 = por %p52, %p53
      %p55 = scmp.ne.s32.totalorder %s44, %s45
      %p56 = scmp.eq.s32.totalorder %s22, 0
      %p57 = por %p55, %p56
      %p58 = scmp.ne.s32.totalorder %s44, %s45
      %p59 = scmp.eq.s32.totalorder %s23, 1
      %p60 = por %p58, %p59
      %p62 = scmp.ne.s32.totalorder %s45, %s61
      %p63 = scmp.eq.s32.totalorder %s23, 0
      %p64 = por %p62, %p63
      %s65 = ssub.s32 %s24, %s36
      %p66 = scmp.eq.s32.totalorder %s65, 0
      %s68 = sadd.s32 %s67, 1
      %s69 = scalar_select %p66, %s67, %s68
      %p72 = pneg %p66
      %p73 = scmp.eq.s32.totalorder %s17, 1
      %p74 = por %p72, %p73
      %p75 = scmp.ne.s32.totalorder %s67, %s70
      %p76 = scmp.eq.s32.totalorder %s17, 0
      %p77 = por %p75, %p76
      %p78 = scmp.ne.s32.totalorder %s67, %s70
      %p79 = scmp.eq.s32.totalorder %s22, 1
      %p80 = por %p78, %p79
      %p81 = scmp.ne.s32.totalorder %s70, %s71
      %p82 = scmp.eq.s32.totalorder %s22, 0
      %p83 = por %p81, %p82
      %p84 = scmp.ne.s32.totalorder %s70, %s71
      %p85 = scmp.eq.s32.totalorder %s23, 1
      %p86 = por %p84, %p85
      %p88 = scmp.ne.s32.totalorder %s71, %s87
      %p89 = scmp.eq.s32.totalorder %s23, 0
      %p90 = por %p88, %p89
      %s91 = ssub.s32 %s24, %s36
      %p92 = scmp.eq.s32.totalorder %s91, 0
      %s94 = sadd.s32 %s93, 1
      %s95 = scalar_select %p92, %s93, %s94
      %p98 = pneg %p92
      %p99 = scmp.eq.s32.totalorder %s17, 1
      %p100 = por %p98, %p99
      %p101 = scmp.ne.s32.totalorder %s93, %s96
      %p102 = scmp.eq.s32.totalorder %s17, 0
      %p103 = por %p101, %p102
      %p104 = scmp.ne.s32.totalorder %s93, %s96
      %p105 = scmp.eq.s32.totalorder %s22, 1
      %p106 = por %p104, %p105
      %p107 = scmp.ne.s32.totalorder %s96, %s97
      %p108 = scmp.eq.s32.totalorder %s22, 0
      %p109 = por %p107, %p108
      %p110 = scmp.ne.s32.totalorder %s96, %s97
      %p111 = scmp.eq.s32.totalorder %s23, 1
      %p112 = por %p110, %p111
      %p114 = scmp.ne.s32.totalorder %s97, %s113
      %p115 = scmp.eq.s32.totalorder %s23, 0
      %p116 = por %p114, %p115
      %p117 = scmp.le.s32.totalorder 1, %s17
      %p118 = scmp.lt.s32.totalorder %s17, 3
      %p119 = pnand %p117, %p118
      %p120 = pneg %p119
      // Predicated region
      $region9: #{tpu_custom_call.1} parent=5 // pred_check
        _
      $region10: #{tpu_custom_call.1} parent=5 // pred_check_branch
        %122 = sbr.rel (%p119) target = $region12
      $region11: #{tpu_custom_call.1} parent=5 // pred_region
        %s123 = ssub.s32 %s17, 1
      $region12: #{tpu_custom_call.1} parent=5 // pred_fallthru
        _
      %p124 = scmp.lt.s32.totalorder %s17, 2
      // Predicated region
      $region13: #{tpu_custom_call.1} parent=5 // pred_check
        %p125 = pneg %p124
      $region14: #{tpu_custom_call.1} parent=5 // pred_check_branch
        %127 = sbr.rel (%p125) target = $region16
      $region15: #{tpu_custom_call.1} parent=5 // pred_region
        // Predicated region
        $region17: #{tpu_custom_call.1} parent=15 // pred_check
          %p128 = pneg %p51
        $region18: #{tpu_custom_call.1} parent=15 // pred_check_branch
          %130 = sbr.rel (%p128) target = $region20
        $region19: #{tpu_custom_call.1} parent=15 // pred_region
          %s131 = sand.u32 %s41, 1
          %s132 = scalar_lea.sflag [#allocation5], %s131
          %s133 = sand.u32 %s41, 1
          %s134 = smul.addr %s133, 16
          %s135 = scalar_lea.vmem [#allocation4], %s134
          %s136 = smul.u32 2, %s25
          %s138 = ssub.s32 256, 256
          %139 = vsyncadd %s132, %s138
          %s140 = smul.addr %s24, 2
          %s141 = sadd.s32 %s136, %s140
          %s142 = smul.addr %s141, 128
          %s143 = scalar_lea.hbm %s0, %s142
          %s145 = sshll.u32 %s135, 4
          %s146 = int_to_ptr.vmem [resolvable:$true] %s145
          %148 = dma.hbm_to_vmem [thread:$0]  %s143, 256, %s146, %s132
        $region20: #{tpu_custom_call.1} parent=15 // pred_fallthru
          _
        // Predicated region
        $region21: #{tpu_custom_call.1} parent=15 // pred_check
          %p149 = pneg %p77
        $region22: #{tpu_custom_call.1} parent=15 // pred_check_branch
          %151 = sbr.rel (%p149) target = $region24
        $region23: #{tpu_custom_call.1} parent=15 // pred_region
          %s152 = sand.u32 %s67, 1
          %s153 = scalar_lea.sflag [#allocation8], %s152
          %s154 = sand.u32 %s67, 1
          %s155 = smul.addr %s154, 8
          %s156 = scalar_lea.vmem [#allocation7], %s155
          %s158 = ssub.s32 128, 128
          %159 = vsyncadd %s153, %s158
          %s160 = smul.addr %s24, 128
          %s161 = scalar_lea.hbm %s1, %s160
          %s163 = sshll.u32 %s156, 4
          %s164 = int_to_ptr.vmem [resolvable:$true] %s163
          %166 = dma.hbm_to_vmem [thread:$0]  %s161, 128, %s164, %s153
        $region24: #{tpu_custom_call.1} parent=15 // pred_fallthru
          _
      $region16: #{tpu_custom_call.1} parent=5 // pred_fallthru
        _
      %p167 = scmp.le.s32.totalorder 1, %s17
      %p168 = scmp.lt.s32.totalorder %s17, 3
      %p169 = pnand %p167, %p168
      %p170 = pneg %p169
      // Predicated region
      $region25: #{tpu_custom_call.1} parent=5 // pred_check
        _
      $region26: #{tpu_custom_call.1} parent=5 // pred_check_branch
        %172 = sbr.rel (%p169) target = $region28
      $region27: #{tpu_custom_call.1} parent=5 // pred_region
        %s173 = ssub.s32 %s17, 1
        %s174 = sand.u32 %s44, 1
        %s175 = scalar_lea.sflag [#allocation5], %s174
        %s176 = sand.u32 %s44, 1
        %s177 = smul.addr %s176, 16
        %s178 = scalar_lea.vmem [#allocation4], %s177
        // Predicated region
        $region29: #{tpu_custom_call.1} parent=27 // pred_check
          %p179 = pneg %p57
        $region30: #{tpu_custom_call.1} parent=27 // pred_check_branch
          %181 = sbr.rel (%p179) target = $region32
        $region31: #{tpu_custom_call.1} parent=27 // pred_region
          %182 = dma.done %s175, 256
        $region32: #{tpu_custom_call.1} parent=27 // pred_fallthru
          _
        %s183 = sand.u32 %s70, 1
        %s184 = scalar_lea.sflag [#allocation8], %s183
        %s185 = sand.u32 %s70, 1
        %s186 = smul.addr %s185, 8
        %s187 = scalar_lea.vmem [#allocation7], %s186
        // Predicated region
        $region33: #{tpu_custom_call.1} parent=27 // pred_check
          %p188 = pneg %p83
        $region34: #{tpu_custom_call.1} parent=27 // pred_check_branch
          %190 = sbr.rel (%p188) target = $region36
        $region35: #{tpu_custom_call.1} parent=27 // pred_region
          %191 = dma.done %s184, 128
        $region36: #{tpu_custom_call.1} parent=27 // pred_fallthru
          _
        %s192 = sand.u32 %s44, 1
        %s193 = scalar_lea.sflag [#allocation5], %s192
        %s194 = sand.u32 %s44, 1
        %s195 = smul.addr %s194, 16
        %s196 = scalar_lea.vmem [#allocation4], %s195
        %p197 = pneg %p57
        %p198 = pneg %p54
        %s199 = sand.u32 %s70, 1
        %s200 = scalar_lea.sflag [#allocation8], %s199
        %s201 = sand.u32 %s70, 1
        %s202 = smul.addr %s201, 8
        %s203 = scalar_lea.vmem [#allocation7], %s202
        %p204 = pneg %p83
        %p205 = pneg %p80
        %p206 = pneg %p109
        %p207 = pneg %p106
        %s208 = sand.u32 %s96, 1
        %s209 = scalar_lea.sflag [#allocation6], %s208
        %s210 = sand.u32 %s96, 1
        %s211 = scalar_lea.vmem [#allocation9], %s210
        %s212 = smul.u32 2, %s27
        %p214 = scmp.eq.s32.totalorder %s27, 0
        // Predicated region
        $region37: #{tpu_custom_call.1} parent=27 // pred_check
          %p215 = pneg %p214
        $region38: #{tpu_custom_call.1} parent=27 // pred_check_branch
          %217 = sbr.rel (%p215) target = $region40
        $region39: #{tpu_custom_call.1} parent=27 // pred_region
          %vm218 = vcmask 64512
          %219 = vst.msk [vmem:[#allocation2] sm:$0xff] %vm218, 0.0
          %vm220 = vcmask 7168
          %221 = vst.msk [vmem:[#allocation3] sm:$0xff] %vm220, 0.0
        $region40: #{tpu_custom_call.1} parent=27 // pred_fallthru
          _
        %v222 = vld [vmem:[%s178] sm:$0xff]
        %v223 = vld [vmem:[%s178 + $0x8] sm:$0xff]
        %v224 = vmul.f32 %v222, 0.5
        %v225 = vmul.f32 %v223, 0.5
        %v226 = vtanh.pop %v224
        %v227 = vtanh.pop %v225
        %v228 = vmul.f32 %v226, 0.5
        %v229 = vmul.f32 %v227, 0.5
        %v230 = vadd.f32 %v228, 0.5
        %v231 = vadd.f32 %v229, 0.5
        %v232 = vpack.c.bf16 %v230, %v230
        %v233 = vpack.c.bf16 %v231, %v231
        %v234 = vld [vmem:[#allocation2] sm:$0xff]
        %235 = vmatprep.subr.bf16.mxu0 %v233
        %236 = vmatpush1.bf16.xpose.msra.mxu0 %v232
        %237 = vmatprep.subr.bf16.mxu0 0
        %238 = vmatpush1.bf16.xpose.msra.mxu0 0
        %239 = vmatprep.subr.bf16.mxu0 0
        %240 = vmatpush1.bf16.xpose.msra.mxu0 0
        %241 = vmatprep.subr.bf16.mxu0 0
        %242 = vmatpush1.bf16.xpose.msra.mxu0 0
        %243 = vmatprep.subr.bf16.mxu0 0
        %244 = vmatpush1.bf16.xpose.msra.mxu0 0
        %245 = vmatprep.subr.bf16.mxu0 0
        %246 = vmatpush1.bf16.xpose.msra.mxu0 0
        %247 = vmatprep.subr.bf16.mxu0 0
        %248 = vmatpush1.bf16.xpose.msra.mxu0 0
        %249 = vmatprep.subr.bf16.mxu0 0
        %250 = vmatpush1.bf16.xpose.msra.mxu0 0
        %251 = vmatprep.subr.bf16.mxu0 0
        %252 = vmatpush1.bf16.xpose.msra.mxu0 0
        %253 = vmatprep.subr.bf16.mxu0 0
        %254 = vmatpush1.bf16.xpose.msra.mxu0 0
        %255 = vmatprep.subr.bf16.mxu0 0
        %256 = vmatpush1.bf16.xpose.msra.mxu0 0
        %257 = vmatprep.subr.bf16.mxu0 0
        %258 = vmatpush1.bf16.xpose.msra.mxu0 0
        %259 = vmatprep.subr.bf16.mxu0 0
        %260 = vmatpush1.bf16.xpose.msra.mxu0 0
        %261 = vmatprep.subr.bf16.mxu0 0
        %262 = vmatpush1.bf16.xpose.msra.mxu0 0
        %263 = vmatprep.subr.bf16.mxu0 0
        %264 = vmatpush1.bf16.xpose.msra.mxu0 0
        %265 = vmatprep.subr.bf16.mxu0 0
        %266 = vmatpush1.bf16.xpose.msra.mxu0 0
        %267 = vmatprep.mubr.bf16.mxu0 %v233
        %268 = vmatmul.mubr.bf16.gmra.mrb[0].mxu0 %v232
        %v269 = vpop.f32.mrb[0].mxu0
        %v270 = vadd.f32 0.0, %v269
        %v271 = vpop.f32.mrb[0].mxu0
        %v272 = vpop.f32.mrb[0].mxu0
        %v273 = vpop.f32.mrb[0].mxu0
        %274 = vdwg.mxu0
        %v275 = vadd.f32 %v234, %v270
        %vm276 = vcmask 64512
        %277 = vst.msk [vmem:[#allocation2] sm:$0xff] %vm276, %v275
        %v278 = vld [vmem:[#allocation3] sm:$0xff]
        %v279 = vadd.f32 %v230, %v231
        %280 = vadd.xlane.f32.xlu0 %v279
        %v281 = vpop.xlane.xlu0 %280
        %v282 = vadd.f32 %v278, %v281
        %vm283 = vcmask 7168
        %284 = vst.msk [vmem:[#allocation3] sm:$0xff] %vm283, %v282
        // Predicated region
        $region41: #{tpu_custom_call.1} parent=27 // pred_check
          %p285 = pneg %p214
        $region42: #{tpu_custom_call.1} parent=27 // pred_check_branch
          %287 = sbr.rel (%p285) target = $region44
        $region43: #{tpu_custom_call.1} parent=27 // pred_region
          %v288 = vld [vmem:[#allocation2] sm:$0xff]
          %v289 = vld [vmem:[#allocation3] sm:$0xff]
          %v290 = vadd.f32 %v289, 0.001
          %v292 = vsel %vm283, 1.0, 0
          %v295 = vsel %vm283, %v290, 0
          %297 = vmatprep.subr.mxu0 0.0
          %298 = vmatpush1.xpose.msra.mxu0 %v295
          %299 = vmatprep.subr.mxu0 0.0
          %300 = vmatpush1.xpose.msra.mxu0 0.0
          %301 = vmatprep.subr.mxu0 0.0
          %302 = vmatpush1.xpose.msra.mxu0 0.0
          %303 = vmatprep.subr.mxu0 0.0
          %304 = vmatpush1.xpose.msra.mxu0 0.0
          %305 = vmatprep.subr.mxu0 0.0
          %306 = vmatpush1.xpose.msra.mxu0 0.0
          %307 = vmatprep.subr.mxu0 0.0
          %308 = vmatpush1.xpose.msra.mxu0 0.0
          %309 = vmatprep.subr.mxu0 0.0
          %310 = vmatpush1.xpose.msra.mxu0 0.0
          %311 = vmatprep.subr.mxu0 0.0
          %312 = vmatpush1.xpose.msra.mxu0 0.0
          %313 = vmatprep.subr.mxu0 0.0
          %314 = vmatpush1.xpose.msra.mxu0 0.0
          %315 = vmatprep.subr.mxu0 0.0
          %316 = vmatpush1.xpose.msra.mxu0 0.0
          %317 = vmatprep.subr.mxu0 0.0
          %318 = vmatpush1.xpose.msra.mxu0 0.0
          %319 = vmatprep.subr.mxu0 0.0
          %320 = vmatpush1.xpose.msra.mxu0 0.0
          %321 = vmatprep.subr.mxu0 0.0
          %322 = vmatpush1.xpose.msra.mxu0 0.0
          %323 = vmatprep.subr.mxu0 0.0
          %324 = vmatpush1.xpose.msra.mxu0 0.0
          %325 = vmatprep.subr.mxu0 0.0
          %326 = vmatpush1.xpose.msra.mxu0 0.0
          %327 = vmatprep.subr.mxu0 0.0
          %328 = vmatpush1.xpose.msra.mxu0 0.0
          %329 = vmatprep.subr.mxu0 0.0
          %330 = vmatpush1.xpose.msra.mxu0 0.0
          %331 = vmatprep.subr.mxu0 0.0
          %332 = vmatpush1.xpose.msra.mxu0 0.0
          %333 = vmatprep.subr.mxu0 0.0
          %334 = vmatpush1.xpose.msra.mxu0 0.0
          %335 = vmatprep.subr.mxu0 0.0
          %336 = vmatpush1.xpose.msra.mxu0 0.0
          %337 = vmatprep.subr.mxu0 0.0
          %338 = vmatpush1.xpose.msra.mxu0 0.0
          %339 = vmatprep.subr.mxu0 0.0
          %340 = vmatpush1.xpose.msra.mxu0 0.0
          %341 = vmatprep.subr.mxu0 0.0
          %342 = vmatpush1.xpose.msra.mxu0 0.0
          %343 = vmatprep.subr.mxu0 0.0
          %344 = vmatpush1.xpose.msra.mxu0 0.0
          %345 = vmatprep.subr.mxu0 0.0
          %346 = vmatpush1.xpose.msra.mxu0 0.0
          %347 = vmatprep.subr.mxu0 0.0
          %348 = vmatpush1.xpose.msra.mxu0 0.0
          %349 = vmatprep.subr.mxu0 0.0
          %350 = vmatpush1.xpose.msra.mxu0 0.0
          %351 = vmatprep.subr.mxu0 0.0
          %352 = vmatpush1.xpose.msra.mxu0 0.0
          %353 = vmatprep.subr.mxu0 0.0
          %354 = vmatpush1.xpose.msra.mxu0 0.0
          %355 = vmatprep.subr.mxu0 0.0
          %356 = vmatpush1.xpose.msra.mxu0 0.0
          %357 = vmatprep.subr.mxu0 0.0
          %358 = vmatpush1.xpose.msra.mxu0 0.0
          %359 = vmatprep.subr.mxu0 0.0
          %360 = vmatpush1.xpose.msra.mxu0 0.0
          %361 = vmatprep.mubr.f32.mxu0 0.0
          %362 = vmatmul.mubr.f32.gmra.mrb[0].mxu0 %v292
          %v363 = vpop.f32.mrb[0].mxu0
          %v364 = vadd.f32 0.0, %v363
          %v365 = vpop.f32.mrb[0].mxu0
          %366 = vdwg.mxu0
          %v367 = vmul.f32 %v288, 2.0
          %368 = vset.pattern.permute.xlu0 0
          %369 = vperm.xlu0 %368, %v290
          %v370 = vpop.permute.xlu0 %369
          %v372 = vadd.f32 %v370, %v364
          %v373 = vrcp.pop %v372
          %v374 = vmul.f32 %v367, %v373
          %v375 = vlaneseq
          %v376 = vshrl.u32 %v375, 7
          %v377 = vlaneseq
          %v378 = vand.u32 %v377, 127
          %vm379 = vcmp.gt.s32.totalorder %v378, %v376
          %v380 = vsel %vm379, %v374, 0.0
          %v381 = vmax.f32 %v380, 0.0
          %v382 = vmin.f32 %v381, 1.0
          %v383 = vld [vmem:[%s187] sm:$0xff]
          %v384 = vlog2.pop %v382
          %v385 = vmul.f32 %v384, 0.6931472
          %v386 = vmax.f32 %v385, -100.0
          %v387 = vsub.f32 1.0, %v382
          %v388 = vlog2.pop %v387
          %v389 = vmul.f32 %v388, 0.6931472
          %v390 = vmax.f32 %v389, -100.0
          %v391 = vmul.f32 %v383, %v386
          %v392 = vsub.f32 1.0, %v383
          %v393 = vmul.f32 %v392, %v390
          %v394 = vadd.f32 %v391, %v393
          %v395 = vsub.f32 0.0, %v394
          %v396 = vsel %vm276, %v395, 0.0
          %v397 = vrot.slane %v396, 4
          %v398 = vadd.f32 %v396, %v397
          %v399 = vrot.slane %v398, 2
          %v400 = vadd.f32 %v398, %v399
          %v401 = vrot.slane %v400, 1
          %v402 = vadd.f32 %v400, %v401
          %vm403 = vcmask 57344
          %404 = vst.msk [vmem:[%s211] sm:$0x1] %vm403, %v402
        $region44: #{tpu_custom_call.1} parent=27 // pred_fallthru
          _
        %s405 = sand.u32 %s96, 1
        %s406 = scalar_lea.sflag [#allocation6], %s405
        %s407 = sand.u32 %s96, 1
        %s408 = scalar_lea.vmem [#allocation9], %s407
        // Predicated region
        $region45: #{tpu_custom_call.1} parent=27 // pred_check
          %p409 = pneg %p106
        $region46: #{tpu_custom_call.1} parent=27 // pred_check_branch
          %411 = sbr.rel (%p409) target = $region48
        $region47: #{tpu_custom_call.1} parent=27 // pred_region
          %s413 = ssub.s32 16, 16
          %414 = vsyncadd %s406, %s413
          %s415 = smul.addr %s26, 16
          %s416 = scalar_lea.hbm %s2, %s415
          %s418 = sshll.u32 %s408, 4
          %s419 = int_to_ptr.vmem [resolvable:$true] %s418
          %421 = dma.vmem_to_hbm [thread:$0]  %s419, 16, %s416, %s406
        $region48: #{tpu_custom_call.1} parent=27 // pred_fallthru
          _
      $region28: #{tpu_custom_call.1} parent=5 // pred_fallthru
        _
      %p422 = scmp.le.s32.totalorder 2, %s17
      // Predicated region
      $region49: #{tpu_custom_call.1} parent=5 // pred_check
        %p423 = pneg %p422
      $region50: #{tpu_custom_call.1} parent=5 // pred_check_branch
        %425 = sbr.rel (%p423) target = $region52
      $region51: #{tpu_custom_call.1} parent=5 // pred_region
        %s426 = ssub.s32 %s17, 2
        // Predicated region
        $region53: #{tpu_custom_call.1} parent=51 // pred_check
          %p427 = pneg %p112
        $region54: #{tpu_custom_call.1} parent=51 // pred_check_branch
          %429 = sbr.rel (%p427) target = $region56
        $region55: #{tpu_custom_call.1} parent=51 // pred_region
          %s430 = sand.u32 %s97, 1
          %s431 = scalar_lea.sflag [#allocation6], %s430
          %s432 = sand.u32 %s97, 1
          %s433 = scalar_lea.vmem [#allocation9], %s432
          %434 = dma.done %s431, 16
        $region56: #{tpu_custom_call.1} parent=51 // pred_fallthru
          _
      $region52: #{tpu_custom_call.1} parent=5 // pred_fallthru
        _
    $region6: #{tpu_custom_call.1} parent=1 // loop_footer
      %s21 = sadd.s32 1, %s17
    $region7: #{tpu_custom_call.1} parent=1 // loop_footer_branch
      %16 = sbr.rel target = $region3
    $region8: #{tpu_custom_call.1} parent=1 // loop_exit
      _
    %435 = vsyncpa [#allocation5], 1
    %s436 = scalar_lea.sflag [#allocation5], 1
    %437 = vsyncpa %s436, 1
    %438 = vsyncpa [#allocation8], 1
    %s439 = scalar_lea.sflag [#allocation8], 1
    %440 = vsyncpa %s439, 1
    %441 = vsyncpa [#allocation6], 1
    %s442 = scalar_lea.sflag [#allocation6], 1
    %443 = vsyncpa %s442, 1

</llo_original>
